<compile_context>
chip_gen: v6e
topology: v6e:2x2x1
jax: 0.10.0
libtpu: 0.0.40
codegen_flags: <defaults>
</compile_context>

<pallas_src>
import functools

import jax
import jax.numpy as jnp
from jax.experimental import pallas as pl
from jax.experimental.pallas import tpu as pltpu


LN_EPS = 1e-5  # PyTorch nn.LayerNorm default


def _critic_kernel(obs_ref, act_ref, trunk_ref, head_ref, w2_ref, out_ref, *,
                   obs_dim, act_dim, hidden):
    in_dim = obs_dim + act_dim
    H = hidden

    obs = obs_ref[...]
    act = act_ref[...]

    # ---- trunk: (split) Linear -> LayerNorm -> Tanh ----
    # trunk_pack rows: [0:in_dim] = W_trunk; then an aligned 8-row misc slab:
    #   row in_dim     = bias
    #   row in_dim + 1 = ln_gamma
    #   row in_dim + 2 = ln_beta
    w_obs = trunk_ref[0:obs_dim, :]
    w_act = trunk_ref[obs_dim:in_dim, :]
    misc = trunk_ref[in_dim:in_dim + 8, :]
    b_t = misc[0:1, :]
    gamma = misc[1:2, :]
    beta = misc[2:3, :]

    h = (jnp.dot(obs, w_obs, preferred_element_type=jnp.float32)
         + jnp.dot(act, w_act, preferred_element_type=jnp.float32)
         + b_t)

    mean = jnp.mean(h, axis=-1, keepdims=True)
    cen = h - mean
    var = jnp.mean(cen * cen, axis=-1, keepdims=True)
    h = cen * jax.lax.rsqrt(var + LN_EPS)
    h = jnp.tanh(h * gamma + beta)

    # ---- fused Q heads, first layer ----
    # head_pack rows: [0:H] = [q1_w1 | q2_w1] (H, 2H); row H = [q1_b1 | q2_b1].
    w1 = head_ref[0:H, :]
    b1 = head_ref[H:H + 1, :]

    # single (B, H) @ (H, 2H) MXU push for both heads' first layers
    z = jnp.maximum(jnp.dot(h, w1, preferred_element_type=jnp.float32) + b1, 0.0)

    # ---- fused Q heads, final H -> 1 projections ----
    # w2_pack rows: [0:2H] = block-diag [[q1_w2, 0], [0, q2_w2]] (2H, 2);
    #               row 2H = [q1_b2, q2_b2].
    w2 = w2_ref[0:2 * H, :]
    b2 = w2_ref[2 * H:2 * H + 1, :]
    out_ref[...] = jnp.dot(z, w2, preferred_element_type=jnp.float32) + b2


@jax.jit
def critic_forward(obs, action, trunk_pack, head_pack, w2_pack):
    """One pallas_call doing the whole hot path; returns (q1, q2) each (B, 1)."""
    B, obs_dim = obs.shape
    act_dim = action.shape[1]
    hidden = trunk_pack.shape[1]

    # Batch tiling: one grid step at toy sizes; shards across TCs at large B.
    bm = B if B <= 128 else 128
    if B % bm != 0:
        bm = B
    grid = (B // bm,)

    kernel = functools.partial(
        _critic_kernel, obs_dim=obs_dim, act_dim=act_dim, hidden=hidden)

    out = pl.pallas_call(
        kernel,
        out_shape=jax.ShapeDtypeStruct((B, 2), jnp.float32),
        grid=grid,
        in_specs=[
            pl.BlockSpec((bm, obs_dim), lambda i: (i, 0)),
            pl.BlockSpec((bm, act_dim), lambda i: (i, 0)),
            pl.BlockSpec(trunk_pack.shape, lambda i: (0, 0)),
            pl.BlockSpec(head_pack.shape, lambda i: (0, 0)),
            pl.BlockSpec(w2_pack.shape, lambda i: (0, 0)),
        ],
        out_specs=pl.BlockSpec((bm, 2), lambda i: (i, 0)),
        compiler_params=pltpu.CompilerParams(
            dimension_semantics=("parallel",)),
    )(obs, action, trunk_pack, head_pack, w2_pack)

    return out[:, 0:1], out[:, 1:2]


def init_params(key, obs_dim, action_dim, hidden_dim):
    """Deterministic synthetic init (scaled normal)."""
    in_dim = obs_dim + action_dim
    keys = jax.random.split(key, 8)

    def lin(k, fan_in, fan_out):
        scale = 1.0 / jnp.sqrt(jnp.float32(fan_in))
        w = jax.random.normal(k, (fan_in, fan_out), jnp.float32) * scale
        b = jnp.zeros((1, fan_out), jnp.float32)
        return w, b

    w_trunk, b_trunk = lin(keys[0], in_dim, hidden_dim)
    q1_w1, q1_b1 = lin(keys[1], hidden_dim, hidden_dim)
    q1_w2, q1_b2 = lin(keys[2], hidden_dim, 1)
    q2_w1, q2_b1 = lin(keys[3], hidden_dim, hidden_dim)
    q2_w2, q2_b2 = lin(keys[4], hidden_dim, 1)

    return dict(
        w_trunk=w_trunk, b_trunk=b_trunk,
        ln_g=jnp.ones((1, hidden_dim), jnp.float32),   # LayerNorm default affine
        ln_b=jnp.zeros((1, hidden_dim), jnp.float32),
        q1_w1=q1_w1, q1_b1=q1_b1, q1_w2=q1_w2, q1_b2=q1_b2,
        q2_w1=q2_w1, q2_b1=q2_b1, q2_w2=q2_w2, q2_b2=q2_b2,
    )


def pack_params(p, obs_dim, action_dim, hidden_dim):
    """Pack the 13 small parameter arrays into three VMEM-friendly slabs (once)."""
    in_dim = obs_dim + action_dim
    H = hidden_dim

    # trunk slab: (in_dim + 8, H)
    trunk = jnp.zeros((in_dim + 8, H), jnp.float32)
    trunk = trunk.at[:in_dim].set(p["w_trunk"])
    trunk = trunk.at[in_dim].set(p["b_trunk"].reshape(H))
    trunk = trunk.at[in_dim + 1].set(p["ln_g"].reshape(H))
    trunk = trunk.at[in_dim + 2].set(p["ln_b"].reshape(H))

    # head slab: (H + 8, 2H) -> [q1_w1 | q2_w1] and their biases
    head = jnp.zeros((H + 8, 2 * H), jnp.float32)
    head = head.at[:H, :H].set(p["q1_w1"])
    head = head.at[:H, H:].set(p["q2_w1"])
    head = head.at[H, :H].set(p["q1_b1"].reshape(H))
    head = head.at[H, H:].set(p["q2_b1"].reshape(H))

    # final-projection slab: (2H + 8, 2) block-diagonal weights + biases
    w2 = jnp.zeros((2 * H + 8, 2), jnp.float32)
    w2 = w2.at[:H, 0].set(p["q1_w2"].reshape(H))
    w2 = w2.at[H:2 * H, 1].set(p["q2_w2"].reshape(H))
    w2 = w2.at[2 * H, 0].set(p["q1_b2"].reshape(()))
    w2 = w2.at[2 * H, 1].set(p["q2_b2"].reshape(()))

    return trunk, head, w2


def critic_reference(obs, action, params):
    """Pure-JAX reference for correctness check (mirrors PyTorch forward)."""
    x = jnp.concatenate([obs, action], axis=-1)
    h = x @ params["w_trunk"] + params["b_trunk"]
    mean = jnp.mean(h, axis=-1, keepdims=True)
    var = jnp.mean((h - mean) ** 2, axis=-1, keepdims=True)
    h = (h - mean) / jnp.sqrt(var + LN_EPS)
    h = jnp.tanh(h * params["ln_g"] + params["ln_b"])

    def q(h, w1, b1, w2, b2):
        z = jnp.maximum(h @ w1 + b1, 0.0)
        return z @ w2 + b2

    return (q(h, params["q1_w1"], params["q1_b1"], params["q1_w2"], params["q1_b2"]),
            q(h, params["q2_w1"], params["q2_b1"], params["q2_w2"], params["q2_b2"]))


if __name__ == "__main__":
    # 'states' Critic: obs_dim=24, action_dim=8, hidden_dim=32, batch=8.
    # TODO(synk): 'pixels' obs_type path (feature_dim trunk + extra hidden layer
    # and post-trunk action concat) is not implemented here.
    B, OBS_DIM, ACT_DIM, HID = 8, 24, 8, 32

    key = jax.random.PRNGKey(0)
    k_obs, k_act, k_par = jax.random.split(key, 3)
    obs = jax.random.normal(k_obs, (B, OBS_DIM), jnp.float32)
    action = jax.random.normal(k_act, (B, ACT_DIM), jnp.float32)
    params = init_params(k_par, OBS_DIM, ACT_DIM, HID)
    trunk_pack, head_pack, w2_pack = pack_params(params, OBS_DIM, ACT_DIM, HID)

    q1, q2 = critic_forward(obs, action, trunk_pack, head_pack, w2_pack)
    q1 = jax.block_until_ready(q1)
    q2 = jax.block_until_ready(q2)

    r1, r2 = critic_reference(obs, action, params)
    assert q1.shape == (B, 1) and q2.shape == (B, 1)
    assert jnp.allclose(q1, r1, atol=1e-4, rtol=1e-4)
    assert jnp.allclose(q2, r2, atol=1e-4, rtol=1e-4)

    print("KERNEL_OK")
</pallas_src>

<mosaic_0001>
module attributes {stable_mosaic.version = 11 : i64} {
  func.func @_critic_kernel(%arg0: i32, %arg1: memref<8x24xf32, #tpu.memory_space<vmem>>, %arg2: memref<8x8xf32, #tpu.memory_space<vmem>>, %arg3: memref<40x32xf32, #tpu.memory_space<vmem>>, %arg4: memref<40x64xf32, #tpu.memory_space<vmem>>, %arg5: memref<72x2xf32, #tpu.memory_space<vmem>>, %arg6: memref<8x2xf32, #tpu.memory_space<vmem>>) attributes {dimension_semantics = [#tpu.dimension_semantics<parallel>], iteration_bounds = array<i64: 1>, scalar_prefetch = 0 : i64, scratch_operands = 0 : i64, tpu.core_type = #tpu.core_type<tc>, window_params = [{transform_indices = @transform_0, window_bounds = array<i64: 8, 24>}, {transform_indices = @transform_1, window_bounds = array<i64: 8, 8>}, {pipeline_mode = #tpu.pipeline_mode<synchronous>, transform_indices = @transform_2, window_bounds = array<i64: 40, 32>}, {pipeline_mode = #tpu.pipeline_mode<synchronous>, transform_indices = @transform_3, window_bounds = array<i64: 40, 64>}, {pipeline_mode = #tpu.pipeline_mode<synchronous>, transform_indices = @transform_4, window_bounds = array<i64: 72, 2>}, {transform_indices = @transform_5, window_bounds = array<i64: 8, 2>}]} {
    %c0 = arith.constant 0 : index
    %c0_0 = arith.constant 0 : index
    %0 = vector.load %arg1[%c0, %c0_0] : memref<8x24xf32, #tpu.memory_space<vmem>>, vector<8x24xf32>
    %c0_1 = arith.constant 0 : index
    %c0_2 = arith.constant 0 : index
    %1 = vector.load %arg2[%c0_1, %c0_2] : memref<8x8xf32, #tpu.memory_space<vmem>>, vector<8x8xf32>
    %c0_3 = arith.constant 0 : index
    %c0_4 = arith.constant 0 : index
    %2 = vector.load %arg3[%c0_3, %c0_4] : memref<40x32xf32, #tpu.memory_space<vmem>>, vector<24x32xf32>
    %c24 = arith.constant 24 : index
    %c0_5 = arith.constant 0 : index
    %3 = vector.load %arg3[%c24, %c0_5] : memref<40x32xf32, #tpu.memory_space<vmem>>, vector<8x32xf32>
    %c32 = arith.constant 32 : index
    %c0_6 = arith.constant 0 : index
    %4 = vector.load %arg3[%c32, %c0_6] : memref<40x32xf32, #tpu.memory_space<vmem>>, vector<8x32xf32>
    %5 = vector.extract_strided_slice %4 {offsets = [0, 0], sizes = [1, 32], strides = [1, 1]} : vector<8x32xf32> to vector<1x32xf32>
    %6 = vector.extract_strided_slice %4 {offsets = [1, 0], sizes = [1, 32], strides = [1, 1]} : vector<8x32xf32> to vector<1x32xf32>
    %7 = vector.extract_strided_slice %4 {offsets = [2, 0], sizes = [1, 32], strides = [1, 1]} : vector<8x32xf32> to vector<1x32xf32>
    %cst = arith.constant dense<0.000000e+00> : vector<8x32xf32>
    %8 = tpu.matmul %0, %2, %cst {dimension_numbers = #tpu.dot_dimension_numbers<[1], [0], [0], [1], [0, 0, 1, 1], [], []>} : vector<8x24xf32>, vector<24x32xf32>, vector<8x32xf32> -> vector<8x32xf32>
    %cst_7 = arith.constant dense<0.000000e+00> : vector<8x32xf32>
    %9 = tpu.matmul %1, %3, %cst_7 {dimension_numbers = #tpu.dot_dimension_numbers<[1], [0], [0], [1], [0, 0, 1, 1], [], []>} : vector<8x8xf32>, vector<8x32xf32>, vector<8x32xf32> -> vector<8x32xf32>
    %10 = arith.addf %8, %9 : vector<8x32xf32>
    %11 = vector.broadcast %5 : vector<1x32xf32> to vector<8x32xf32>
    %12 = arith.addf %10, %11 : vector<8x32xf32>
    %cst_8 = arith.constant dense<0.000000e+00> : vector<8xf32>
    %13 = vector.multi_reduction <add>, %12, %cst_8 [1] : vector<8x32xf32> to vector<8xf32>
    %14 = vector.shape_cast %13 : vector<8xf32> to vector<8x1xf32>
    %cst_9 = arith.constant 3.200000e+01 : f32
    %15 = vector.broadcast %cst_9 : f32 to vector<8x1xf32>
    %16 = arith.divf %14, %15 : vector<8x1xf32>
    %17 = vector.broadcast %16 : vector<8x1xf32> to vector<8x32xf32>
    %18 = arith.subf %12, %17 : vector<8x32xf32>
    %19 = arith.mulf %18, %18 : vector<8x32xf32>
    %cst_10 = arith.constant dense<0.000000e+00> : vector<8xf32>
    %20 = vector.multi_reduction <add>, %19, %cst_10 [1] : vector<8x32xf32> to vector<8xf32>
    %21 = vector.shape_cast %20 : vector<8xf32> to vector<8x1xf32>
    %cst_11 = arith.constant 3.200000e+01 : f32
    %22 = vector.broadcast %cst_11 : f32 to vector<8x1xf32>
    %23 = arith.divf %21, %22 : vector<8x1xf32>
    %cst_12 = arith.constant 9.99999974E-6 : f32
    %24 = vector.broadcast %cst_12 : f32 to vector<8x1xf32>
    %25 = arith.addf %23, %24 : vector<8x1xf32>
    %26 = math.rsqrt %25 : vector<8x1xf32>
    %27 = vector.broadcast %26 : vector<8x1xf32> to vector<8x32xf32>
    %28 = arith.mulf %18, %27 : vector<8x32xf32>
    %29 = vector.broadcast %6 : vector<1x32xf32> to vector<8x32xf32>
    %30 = arith.mulf %28, %29 : vector<8x32xf32>
    %31 = vector.broadcast %7 : vector<1x32xf32> to vector<8x32xf32>
    %32 = arith.addf %30, %31 : vector<8x32xf32>
    %33 = math.tanh %32 : vector<8x32xf32>
    %c0_13 = arith.constant 0 : index
    %c0_14 = arith.constant 0 : index
    %34 = vector.load %arg4[%c0_13, %c0_14] : memref<40x64xf32, #tpu.memory_space<vmem>>, vector<32x64xf32>
    %c32_15 = arith.constant 32 : index
    %c0_16 = arith.constant 0 : index
    %35 = vector.load %arg4[%c32_15, %c0_16] : memref<40x64xf32, #tpu.memory_space<vmem>>, vector<1x64xf32>
    %cst_17 = arith.constant dense<0.000000e+00> : vector<8x64xf32>
    %36 = tpu.matmul %33, %34, %cst_17 {dimension_numbers = #tpu.dot_dimension_numbers<[1], [0], [0], [1], [0, 0, 1, 1], [], []>} : vector<8x32xf32>, vector<32x64xf32>, vector<8x64xf32> -> vector<8x64xf32>
    %37 = vector.broadcast %35 : vector<1x64xf32> to vector<8x64xf32>
    %38 = arith.addf %36, %37 : vector<8x64xf32>
    %cst_18 = arith.constant 0.000000e+00 : f32
    %39 = vector.broadcast %cst_18 : f32 to vector<8x64xf32>
    %40 = arith.maximumf %38, %39 : vector<8x64xf32>
    %c0_19 = arith.constant 0 : index
    %c0_20 = arith.constant 0 : index
    %41 = vector.load %arg5[%c0_19, %c0_20] : memref<72x2xf32, #tpu.memory_space<vmem>>, vector<64x2xf32>
    %c64 = arith.constant 64 : index
    %c0_21 = arith.constant 0 : index
    %42 = vector.load %arg5[%c64, %c0_21] : memref<72x2xf32, #tpu.memory_space<vmem>>, vector<1x2xf32>
    %cst_22 = arith.constant dense<0.000000e+00> : vector<8x2xf32>
    %43 = tpu.matmul %40, %41, %cst_22 {dimension_numbers = #tpu.dot_dimension_numbers<[1], [0], [0], [1], [0, 0, 1, 1], [], []>} : vector<8x64xf32>, vector<64x2xf32>, vector<8x2xf32> -> vector<8x2xf32>
    %44 = vector.broadcast %42 : vector<1x2xf32> to vector<8x2xf32>
    %45 = arith.addf %43, %44 : vector<8x2xf32>
    %c0_23 = arith.constant 0 : index
    %c0_24 = arith.constant 0 : index
    %46 = vector.load %arg6[%c0_23, %c0_24] : memref<8x2xf32, #tpu.memory_space<vmem>>, vector<8x2xf32>
    tpu.vector_store %arg6[%c0_23, %c0_24], %45 {strides = array<i32>} : memref<8x2xf32, #tpu.memory_space<vmem>>, vector<8x2xf32>,
    return
  }
  func.func @transform_0(%arg0: i32) -> (i32, i32) {
    %c0_i32 = arith.constant 0 : i32
    %c0_i32_0 = arith.constant 0 : i32
    return %arg0, %c0_i32 : i32, i32
  }
  func.func @transform_1(%arg0: i32) -> (i32, i32) {
    %c0_i32 = arith.constant 0 : i32
    %c0_i32_0 = arith.constant 0 : i32
    return %arg0, %c0_i32 : i32, i32
  }
  func.func @transform_2(%arg0: i32) -> (i32, i32) {
    %c0_i32 = arith.constant 0 : i32
    %c0_i32_0 = arith.constant 0 : i32
    %c0_i32_1 = arith.constant 0 : i32
    return %c0_i32, %c0_i32_0 : i32, i32
  }
  func.func @transform_3(%arg0: i32) -> (i32, i32) {
    %c0_i32 = arith.constant 0 : i32
    %c0_i32_0 = arith.constant 0 : i32
    %c0_i32_1 = arith.constant 0 : i32
    return %c0_i32, %c0_i32_0 : i32, i32
  }
  func.func @transform_4(%arg0: i32) -> (i32, i32) {
    %c0_i32 = arith.constant 0 : i32
    %c0_i32_0 = arith.constant 0 : i32
    %c0_i32_1 = arith.constant 0 : i32
    return %c0_i32, %c0_i32_0 : i32, i32
  }
  func.func @transform_5(%arg0: i32) -> (i32, i32) {
    %c0_i32 = arith.constant 0 : i32
    %c0_i32_0 = arith.constant 0 : i32
    return %arg0, %c0_i32 : i32, i32
  }
}

</mosaic_0001>

<llo_original>
// kernel: critic_forward.1
$region0: #{critic_forward.1}
  #allocation0 [shape = 'u32[]', space=smem, size = 0x4, offset = 0x4, fixed_abs, tag = 'smem constant byte address 0x4 - core index']
  #allocation1 [shape = 'u32[144,128]{1,0:T(1,128)}', space=vmem, size = 0x12000, scoped, tag = 'internal scratch']
  %s0 = inlined_call_operand.vmem [shape: f32[8,24], index: 0, kind: input, shape index: {}]
  %s1 = inlined_call_operand.vmem [shape: f32[8,8], index: 1, kind: input, shape index: {}]
  %s2 = inlined_call_operand.vmem [shape: f32[40,32], index: 2, kind: input, shape index: {}]
  %s3 = inlined_call_operand.vmem [shape: f32[40,64], index: 3, kind: input, shape index: {}]
  %s4 = inlined_call_operand.vmem [shape: f32[72,2], index: 4, kind: input, shape index: {}]
  %s5 = inlined_call_operand.vmem [shape: f32[8,2], index: 5, kind: output, shape index: {}]
  %s6 = sld [smem:[#allocation0]]
  $region30: #{critic_forward.1} parent=0
    _
  %s8 = ssub.s32 1, %s6
  %s9 = scalar_select 0, %s8, %s6
  // Predicated region
  $region2: #{critic_forward.1} parent=0 // pred_check
    _
  $region3: #{critic_forward.1} parent=0 // pred_check_branch
    %11 = sbr.rel (0) target = $region5
  $region4: #{critic_forward.1} parent=0 // pred_region
    _
  $region5: #{critic_forward.1} parent=0 // pred_fallthru
    _
  // Predicated region
  $region6: #{critic_forward.1} parent=0 // pred_check
    _
  $region7: #{critic_forward.1} parent=0 // pred_check_branch
    %13 = sbr.rel (0) target = $region9
  $region8: #{critic_forward.1} parent=0 // pred_region
    _
  $region9: #{critic_forward.1} parent=0 // pred_fallthru
    _
  // Predicated region
  $region10: #{critic_forward.1} parent=0 // pred_check
    _
  $region11: #{critic_forward.1} parent=0 // pred_check_branch
    %15 = sbr.rel (0) target = $region13
  $region12: #{critic_forward.1} parent=0 // pred_region
    _
  $region13: #{critic_forward.1} parent=0 // pred_fallthru
    _
  // Predicated region
  $region14: #{critic_forward.1} parent=0 // pred_check
    _
  $region15: #{critic_forward.1} parent=0 // pred_check_branch
    %17 = sbr.rel (0) target = $region17
  $region16: #{critic_forward.1} parent=0 // pred_region
    _
  $region17: #{critic_forward.1} parent=0 // pred_fallthru
    _
  // Predicated region
  $region18: #{critic_forward.1} parent=0 // pred_check
    _
  $region19: #{critic_forward.1} parent=0 // pred_check_branch
    %19 = sbr.rel (0) target = $region21
  $region20: #{critic_forward.1} parent=0 // pred_region
    _
  $region21: #{critic_forward.1} parent=0 // pred_fallthru
    _
  %v20 = vld [vmem:[%s0] sm:$0xff]
  %v21 = vld [vmem:[%s1] sm:$0xff]
  %v22 = vld [vmem:[%s2] sm:$0xff]
  %v23 = vld [vmem:[%s2 + $0x8] sm:$0xff]
  %v24 = vld [vmem:[%s2 + $0x10] sm:$0xff]
  %v25 = vld [vmem:[%s2 + $0x18] sm:$0xff]
  %v26 = vld [vmem:[%s2 + $0x20] sm:$0xff]
  %vm27 = vcmask 64512
  %v29 = vsel %vm27, %v21, 0
  %31 = vmatprep.subr.mxu0 0.0
  %32 = vmatpush1.msra.mxu0 0.0
  %33 = vmatprep.subr.mxu0 0.0
  %34 = vmatpush1.msra.mxu0 0.0
  %35 = vmatprep.subr.mxu0 0.0
  %36 = vmatpush1.msra.mxu0 0.0
  %37 = vmatprep.subr.mxu0 0.0
  %38 = vmatpush1.msra.mxu0 0.0
  %39 = vmatprep.subr.mxu0 0.0
  %40 = vmatpush1.msra.mxu0 0.0
  %41 = vmatprep.subr.mxu0 0.0
  %42 = vmatpush1.msra.mxu0 0.0
  %43 = vmatprep.subr.mxu0 0.0
  %44 = vmatpush1.msra.mxu0 0.0
  %45 = vmatprep.subr.mxu0 0.0
  %46 = vmatpush1.msra.mxu0 0.0
  %47 = vmatprep.subr.mxu0 0.0
  %48 = vmatpush1.msra.mxu0 0.0
  %49 = vmatprep.subr.mxu0 0.0
  %50 = vmatpush1.msra.mxu0 0.0
  %51 = vmatprep.subr.mxu0 0.0
  %52 = vmatpush1.msra.mxu0 0.0
  %53 = vmatprep.subr.mxu0 0.0
  %54 = vmatpush1.msra.mxu0 0.0
  %55 = vmatprep.subr.mxu0 0.0
  %56 = vmatpush1.msra.mxu0 0.0
  %57 = vmatprep.subr.mxu0 0.0
  %58 = vmatpush1.msra.mxu0 0.0
  %59 = vmatprep.subr.mxu0 0.0
  %60 = vmatpush1.msra.mxu0 0.0
  %61 = vmatprep.subr.mxu0 0.0
  %62 = vmatpush1.msra.mxu0 %v25
  %63 = vmatprep.subr.mxu0 0.0
  %64 = vmatpush2.msra.mxu0 0.0
  %65 = vmatprep.subr.mxu0 0.0
  %66 = vmatpush2.msra.mxu0 0.0
  %67 = vmatprep.subr.mxu0 0.0
  %68 = vmatpush2.msra.mxu0 0.0
  %69 = vmatprep.subr.mxu0 0.0
  %70 = vmatpush2.msra.mxu0 0.0
  %71 = vmatprep.subr.mxu0 0.0
  %72 = vmatpush2.msra.mxu0 0.0
  %73 = vmatprep.subr.mxu0 0.0
  %74 = vmatpush2.msra.mxu0 0.0
  %75 = vmatprep.subr.mxu0 0.0
  %76 = vmatpush2.msra.mxu0 0.0
  %77 = vmatprep.subr.mxu0 0.0
  %78 = vmatpush2.msra.mxu0 0.0
  %79 = vmatprep.subr.mxu0 0.0
  %80 = vmatpush2.msra.mxu0 0.0
  %81 = vmatprep.subr.mxu0 0.0
  %82 = vmatpush2.msra.mxu0 0.0
  %83 = vmatprep.subr.mxu0 0.0
  %84 = vmatpush2.msra.mxu0 0.0
  %85 = vmatprep.subr.mxu0 0.0
  %86 = vmatpush2.msra.mxu0 0.0
  %87 = vmatprep.subr.mxu0 0.0
  %88 = vmatpush2.msra.mxu0 0.0
  %89 = vmatprep.subr.mxu0 0.0
  %90 = vmatpush2.msra.mxu0 0.0
  %91 = vmatprep.subr.mxu0 0.0
  %92 = vmatpush2.msra.mxu0 0.0
  %93 = vmatprep.subr.mxu0 0.0
  %94 = vmatpush2.msra.mxu0 0.0
  %95 = vmatprep.mubr.f32.mxu0 0.0
  %96 = vmatmul.mubr.f32.gmra.mxu0 %v29
  %v97 = vpop.f32.mrf.mxu0
  %v98 = vadd.f32 0.0, %v97
  %v99 = vpop.f32.mrf.mxu0
  %100 = vdwg.mxu0
  %vm101 = vcmask 195584
  %v103 = vsel %vm101, %v20, 0
  %105 = vmatprep.subr.mxu0 0.0
  %106 = vmatpush1.msra.mxu0 0.0
  %107 = vmatprep.subr.mxu0 0.0
  %108 = vmatpush1.msra.mxu0 0.0
  %109 = vmatprep.subr.mxu0 0.0
  %110 = vmatpush1.msra.mxu0 0.0
  %111 = vmatprep.subr.mxu0 0.0
  %112 = vmatpush1.msra.mxu0 0.0
  %113 = vmatprep.subr.mxu0 0.0
  %114 = vmatpush1.msra.mxu0 0.0
  %115 = vmatprep.subr.mxu0 0.0
  %116 = vmatpush1.msra.mxu0 0.0
  %117 = vmatprep.subr.mxu0 0.0
  %118 = vmatpush1.msra.mxu0 0.0
  %119 = vmatprep.subr.mxu0 0.0
  %120 = vmatpush1.msra.mxu0 0.0
  %121 = vmatprep.subr.mxu0 0.0
  %122 = vmatpush1.msra.mxu0 0.0
  %123 = vmatprep.subr.mxu0 0.0
  %124 = vmatpush1.msra.mxu0 0.0
  %125 = vmatprep.subr.mxu0 0.0
  %126 = vmatpush1.msra.mxu0 0.0
  %127 = vmatprep.subr.mxu0 0.0
  %128 = vmatpush1.msra.mxu0 0.0
  %129 = vmatprep.subr.mxu0 0.0
  %130 = vmatpush1.msra.mxu0 0.0
  %131 = vmatprep.subr.mxu0 0.0
  %132 = vmatpush1.msra.mxu0 %v24
  %133 = vmatprep.subr.mxu0 0.0
  %134 = vmatpush1.msra.mxu0 %v23
  %135 = vmatprep.subr.mxu0 0.0
  %136 = vmatpush1.msra.mxu0 %v22
  %137 = vmatprep.subr.mxu0 0.0
  %138 = vmatpush2.msra.mxu0 0.0
  %139 = vmatprep.subr.mxu0 0.0
  %140 = vmatpush2.msra.mxu0 0.0
  %141 = vmatprep.subr.mxu0 0.0
  %142 = vmatpush2.msra.mxu0 0.0
  %143 = vmatprep.subr.mxu0 0.0
  %144 = vmatpush2.msra.mxu0 0.0
  %145 = vmatprep.subr.mxu0 0.0
  %146 = vmatpush2.msra.mxu0 0.0
  %147 = vmatprep.subr.mxu0 0.0
  %148 = vmatpush2.msra.mxu0 0.0
  %149 = vmatprep.subr.mxu0 0.0
  %150 = vmatpush2.msra.mxu0 0.0
  %151 = vmatprep.subr.mxu0 0.0
  %152 = vmatpush2.msra.mxu0 0.0
  %153 = vmatprep.subr.mxu0 0.0
  %154 = vmatpush2.msra.mxu0 0.0
  %155 = vmatprep.subr.mxu0 0.0
  %156 = vmatpush2.msra.mxu0 0.0
  %157 = vmatprep.subr.mxu0 0.0
  %158 = vmatpush2.msra.mxu0 0.0
  %159 = vmatprep.subr.mxu0 0.0
  %160 = vmatpush2.msra.mxu0 0.0
  %161 = vmatprep.subr.mxu0 0.0
  %162 = vmatpush2.msra.mxu0 0.0
  %163 = vmatprep.subr.mxu0 0.0
  %164 = vmatpush2.msra.mxu0 0.0
  %165 = vmatprep.subr.mxu0 0.0
  %166 = vmatpush2.msra.mxu0 0.0
  %167 = vmatprep.subr.mxu0 0.0
  %168 = vmatpush2.msra.mxu0 0.0
  %169 = vmatprep.mubr.f32.mxu0 0.0
  %170 = vmatmul.mubr.f32.gmra.mxu0 %v103
  %v171 = vpop.f32.mrf.mxu0
  %v172 = vadd.f32 %v98, %v171
  %v173 = vpop.f32.mrf.mxu0
  %174 = vdwg.mxu0
  %v175 = vlaneseq
  %v176 = vshrl.u32 %v175, 7
  %v177 = vsub.s32 0, %v176
  %v178 = vrot.slane %v26, %v177
  %v179 = vadd.f32 %v172, %v178
  %vm180 = vcmask 261120
  %v181 = vsel %vm180, %v179, 0.0
  %182 = vadd.xlane.f32.xlu0 %v181
  %v183 = vpop.xlane.xlu0 %182
  %v184 = vrcp.pop 32.0
  %v185 = vmul.f32 %v183, %v184
  %v186 = vsub.f32 %v179, %v185
  %v187 = vmul.f32 %v186, %v186
  %v188 = vsel %vm180, %v187, 0.0
  %189 = vadd.xlane.f32.xlu0 %v188
  %v190 = vpop.xlane.xlu0 %189
  %v191 = vmul.f32 %v190, %v184
  %v192 = vadd.f32 %v191, 1e-05
  %v193 = vrsqrt.pop %v192
  %v194 = vmul.f32 %v186, %v193
  %v195 = vlaneseq
  %v196 = vshrl.u32 %v195, 7
  %v197 = vsub.s32 1, %v196
  %v198 = vrot.slane %v26, %v197
  %v199 = vmul.f32 %v194, %v198
  %v200 = vlaneseq
  %v201 = vshrl.u32 %v200, 7
  %v202 = vsub.s32 2, %v201
  %v203 = vrot.slane %v26, %v202
  %v204 = vadd.f32 %v199, %v203
  %v205 = vtanh.pop %v204
  %v206 = vld [vmem:[%s3] sm:$0xff]
  %v207 = vld [vmem:[%s3 + $0x8] sm:$0xff]
  %v208 = vld [vmem:[%s3 + $0x10] sm:$0xff]
  %v209 = vld [vmem:[%s3 + $0x18] sm:$0xff]
  %v210 = vld [vmem:[%s3 + $0x20] sm:$0x1]
  %v211 = vlaneseq
  %v212 = vshrl.u32 %v211, 7
  %v213 = vsub.s32 0, %v212
  %v214 = vrot.slane %v210, %v213
  %v216 = vsel %vm180, %v205, 0
  %218 = vmatprep.subr.mxu0 0.0
  %219 = vmatpush1.msra.mxu0 0.0
  %220 = vmatprep.subr.mxu0 0.0
  %221 = vmatpush1.msra.mxu0 0.0
  %222 = vmatprep.subr.mxu0 0.0
  %223 = vmatpush1.msra.mxu0 0.0
  %224 = vmatprep.subr.mxu0 0.0
  %225 = vmatpush1.msra.mxu0 0.0
  %226 = vmatprep.subr.mxu0 0.0
  %227 = vmatpush1.msra.mxu0 0.0
  %228 = vmatprep.subr.mxu0 0.0
  %229 = vmatpush1.msra.mxu0 0.0
  %230 = vmatprep.subr.mxu0 0.0
  %231 = vmatpush1.msra.mxu0 0.0
  %232 = vmatprep.subr.mxu0 0.0
  %233 = vmatpush1.msra.mxu0 0.0
  %234 = vmatprep.subr.mxu0 0.0
  %235 = vmatpush1.msra.mxu0 0.0
  %236 = vmatprep.subr.mxu0 0.0
  %237 = vmatpush1.msra.mxu0 0.0
  %238 = vmatprep.subr.mxu0 0.0
  %239 = vmatpush1.msra.mxu0 0.0
  %240 = vmatprep.subr.mxu0 0.0
  %241 = vmatpush1.msra.mxu0 0.0
  %242 = vmatprep.subr.mxu0 0.0
  %243 = vmatpush1.msra.mxu0 %v209
  %244 = vmatprep.subr.mxu0 0.0
  %245 = vmatpush1.msra.mxu0 %v208
  %246 = vmatprep.subr.mxu0 0.0
  %247 = vmatpush1.msra.mxu0 %v207
  %248 = vmatprep.subr.mxu0 0.0
  %249 = vmatpush1.msra.mxu0 %v206
  %250 = vmatprep.subr.mxu0 0.0
  %251 = vmatpush2.msra.mxu0 0.0
  %252 = vmatprep.subr.mxu0 0.0
  %253 = vmatpush2.msra.mxu0 0.0
  %254 = vmatprep.subr.mxu0 0.0
  %255 = vmatpush2.msra.mxu0 0.0
  %256 = vmatprep.subr.mxu0 0.0
  %257 = vmatpush2.msra.mxu0 0.0
  %258 = vmatprep.subr.mxu0 0.0
  %259 = vmatpush2.msra.mxu0 0.0
  %260 = vmatprep.subr.mxu0 0.0
  %261 = vmatpush2.msra.mxu0 0.0
  %262 = vmatprep.subr.mxu0 0.0
  %263 = vmatpush2.msra.mxu0 0.0
  %264 = vmatprep.subr.mxu0 0.0
  %265 = vmatpush2.msra.mxu0 0.0
  %266 = vmatprep.subr.mxu0 0.0
  %267 = vmatpush2.msra.mxu0 0.0
  %268 = vmatprep.subr.mxu0 0.0
  %269 = vmatpush2.msra.mxu0 0.0
  %270 = vmatprep.subr.mxu0 0.0
  %271 = vmatpush2.msra.mxu0 0.0
  %272 = vmatprep.subr.mxu0 0.0
  %273 = vmatpush2.msra.mxu0 0.0
  %274 = vmatprep.subr.mxu0 0.0
  %275 = vmatpush2.msra.mxu0 0.0
  %276 = vmatprep.subr.mxu0 0.0
  %277 = vmatpush2.msra.mxu0 0.0
  %278 = vmatprep.subr.mxu0 0.0
  %279 = vmatpush2.msra.mxu0 0.0
  %280 = vmatprep.subr.mxu0 0.0
  %281 = vmatpush2.msra.mxu0 0.0
  %282 = vmatprep.mubr.f32.mxu0 0.0
  %283 = vmatmul.mubr.f32.gmra.mxu0 %v216
  %v284 = vpop.f32.mrf.mxu0
  %v285 = vadd.f32 %v214, %v284
  %v286 = vpop.f32.mrf.mxu0
  %287 = vdwg.mxu0
  %v288 = vmax.f32 %v285, 0.0
  %v289 = vld [vmem:[%s4] sm:$0xff]
  %v290 = vld [vmem:[%s4 + $0x8] sm:$0xff]
  %v291 = vld [vmem:[%s4 + $0x10] sm:$0xff]
  %v292 = vld [vmem:[%s4 + $0x18] sm:$0xff]
  %v293 = vld [vmem:[%s4 + $0x20] sm:$0xff]
  %v294 = vld [vmem:[%s4 + $0x28] sm:$0xff]
  %v295 = vld [vmem:[%s4 + $0x30] sm:$0xff]
  %v296 = vld [vmem:[%s4 + $0x38] sm:$0xff]
  %v297 = vld [vmem:[%s4 + $0x40] sm:$0x1]
  %v298 = vlaneseq
  %v299 = vshrl.u32 %v298, 7
  %v300 = vsub.s32 0, %v299
  %v301 = vrot.slane %v297, %v300
  %vm302 = vcmask 523264
  %v304 = vsel %vm302, %v288, 0
  %306 = vmatprep.subr.mxu0 0.0
  %307 = vmatpush1.msra.mxu0 0.0
  %308 = vmatprep.subr.mxu0 0.0
  %309 = vmatpush1.msra.mxu0 0.0
  %310 = vmatprep.subr.mxu0 0.0
  %311 = vmatpush1.msra.mxu0 0.0
  %312 = vmatprep.subr.mxu0 0.0
  %313 = vmatpush1.msra.mxu0 0.0
  %314 = vmatprep.subr.mxu0 0.0
  %315 = vmatpush1.msra.mxu0 0.0
  %316 = vmatprep.subr.mxu0 0.0
  %317 = vmatpush1.msra.mxu0 0.0
  %318 = vmatprep.subr.mxu0 0.0
  %319 = vmatpush1.msra.mxu0 0.0
  %320 = vmatprep.subr.mxu0 0.0
  %321 = vmatpush1.msra.mxu0 0.0
  %322 = vmatprep.subr.mxu0 0.0
  %323 = vmatpush1.msra.mxu0 %v296
  %324 = vmatprep.subr.mxu0 0.0
  %325 = vmatpush1.msra.mxu0 %v295
  %326 = vmatprep.subr.mxu0 0.0
  %327 = vmatpush1.msra.mxu0 %v294
  %328 = vmatprep.subr.mxu0 0.0
  %329 = vmatpush1.msra.mxu0 %v293
  %330 = vmatprep.subr.mxu0 0.0
  %331 = vmatpush1.msra.mxu0 %v292
  %332 = vmatprep.subr.mxu0 0.0
  %333 = vmatpush1.msra.mxu0 %v291
  %334 = vmatprep.subr.mxu0 0.0
  %335 = vmatpush1.msra.mxu0 %v290
  %336 = vmatprep.subr.mxu0 0.0
  %337 = vmatpush1.msra.mxu0 %v289
  %338 = vmatprep.subr.mxu0 0.0
  %339 = vmatpush2.msra.mxu0 0.0
  %340 = vmatprep.subr.mxu0 0.0
  %341 = vmatpush2.msra.mxu0 0.0
  %342 = vmatprep.subr.mxu0 0.0
  %343 = vmatpush2.msra.mxu0 0.0
  %344 = vmatprep.subr.mxu0 0.0
  %345 = vmatpush2.msra.mxu0 0.0
  %346 = vmatprep.subr.mxu0 0.0
  %347 = vmatpush2.msra.mxu0 0.0
  %348 = vmatprep.subr.mxu0 0.0
  %349 = vmatpush2.msra.mxu0 0.0
  %350 = vmatprep.subr.mxu0 0.0
  %351 = vmatpush2.msra.mxu0 0.0
  %352 = vmatprep.subr.mxu0 0.0
  %353 = vmatpush2.msra.mxu0 0.0
  %354 = vmatprep.subr.mxu0 0.0
  %355 = vmatpush2.msra.mxu0 0.0
  %356 = vmatprep.subr.mxu0 0.0
  %357 = vmatpush2.msra.mxu0 0.0
  %358 = vmatprep.subr.mxu0 0.0
  %359 = vmatpush2.msra.mxu0 0.0
  %360 = vmatprep.subr.mxu0 0.0
  %361 = vmatpush2.msra.mxu0 0.0
  %362 = vmatprep.subr.mxu0 0.0
  %363 = vmatpush2.msra.mxu0 0.0
  %364 = vmatprep.subr.mxu0 0.0
  %365 = vmatpush2.msra.mxu0 0.0
  %366 = vmatprep.subr.mxu0 0.0
  %367 = vmatpush2.msra.mxu0 0.0
  %368 = vmatprep.subr.mxu0 0.0
  %369 = vmatpush2.msra.mxu0 0.0
  %370 = vmatprep.mubr.f32.mxu0 0.0
  %371 = vmatmul.mubr.f32.gmra.mxu0 %v304
  %v372 = vpop.f32.mrf.mxu0
  %v373 = vadd.f32 %v301, %v372
  %v374 = vpop.f32.mrf.mxu0
  %375 = vdwg.mxu0
  %vm376 = vcmask 15360
  %377 = vst.msk [vmem:[%s5] sm:$0xff] %vm376, %v373
  // Predicated region
  $region22: #{critic_forward.1} parent=0 // pred_check
    _
  $region23: #{critic_forward.1} parent=0 // pred_check_branch
    %379 = sbr.rel (0) target = $region25
  $region24: #{critic_forward.1} parent=0 // pred_region
    _
  $region25: #{critic_forward.1} parent=0 // pred_fallthru
    _
  // Predicated region
  $region26: #{critic_forward.1} parent=0 // pred_check
    _
  $region27: #{critic_forward.1} parent=0 // pred_check_branch
    %381 = sbr.rel (0) target = $region29
  $region28: #{critic_forward.1} parent=0 // pred_region
    _
  $region29: #{critic_forward.1} parent=0 // pred_fallthru
    _

</llo_original>
